<compile_context>
chip_gen: v7x
topology: tpu7x:2x2x1
jax: 0.10.0
libtpu: 0.0.40
codegen_flags: <defaults>
</compile_context>

<pallas_src>
import functools

import jax
import jax.numpy as jnp
import numpy as np
from jax.experimental import pallas as pl
from jax.experimental.pallas import tpu as pltpu


H = W = 4
CIN = 16
COUT = 32
HID = 128
NPIECE = 16
BOARD_FLAT = CIN * H * W      # 256  (MXU-aligned K)
CONV_FLAT = COUT * H * W      # 512  (MXU-aligned N / K)
HEAD_PAD = 128                # lane-dense merged-head output width
MAX_TILE = 2048               # row-tile cap (double-buffered working set stays well <32 MiB)


# ------------------------------ fused kernel --------------------------------

def _fused_kernel(xb_ref, xp_ref, wexp_ref, bexp_ref,
                  w1a_ref, w1b_ref, b1_ref, wh_ref, bh_ref, out_ref):
    """Whole forward: dense-conv matmul -> trunk -> merged heads, all in VMEM.

    Matmul operands bf16 (MXU), accumulation / bias / ReLU in f32; activations
    stored bf16 to halve VMEM spill + output writeback traffic.
    """
    xb = xb_ref[...].astype(jnp.bfloat16)                       # (tb, 256)
    xp = xp_ref[...].astype(jnp.bfloat16)                       # (tb, 16)

    # conv as one dense matmul; W_exp columns are already in NCHW channel-major
    # flatten order, so the result feeds the trunk directly (no transpose).
    conv = jnp.dot(xb, wexp_ref[...], preferred_element_type=jnp.float32)
    conv = jnp.maximum(conv + bexp_ref[...], 0.0).astype(jnp.bfloat16)   # (tb, 512)

    # trunk: concat([flat, x_piece]) @ W1 folded into two matmuls (K=512 and K=16)
    h = jnp.dot(conv, w1a_ref[...], preferred_element_type=jnp.float32)
    h = h + jnp.dot(xp, w1b_ref[...], preferred_element_type=jnp.float32)
    h = jnp.maximum(h + b1_ref[...], 0.0).astype(jnp.bfloat16)          # (tb, 128)

    # merged heads (board | piece | zero-pad) -> lane-dense (tb, 128) bf16 slab
    out_ref[...] = (jnp.dot(h, wh_ref[...], preferred_element_type=jnp.float32)
                    + bh_ref[...]).astype(out_ref.dtype)


# ------------------------------- wrapper -------------------------------------

def _pick_row_tile(B: int) -> int:
    """Row tile: full batch for tiny B; otherwise >=2 tiles (v7x megacore), <=2048 rows."""
    if B <= 16:
        return B
    tb = -(-B // 2)                      # cdiv(B, 2) -> at least 2 grid steps
    tb = ((tb + 15) // 16) * 16          # multiple of 16 (bf16 sublane packing)
    return min(tb, MAX_TILE)


@functools.partial(jax.jit)
def quarto_forward(x_board, x_piece, fused):
    B = x_board.shape[0]

    # Pass inputs in their native float dtype (bf16 stays bf16 -> half the dominant
    # xb DMA bytes); no extra wrapper-side cast pass is added for f32 callers.
    xb = x_board.reshape(B, BOARD_FLAT)                         # NCHW flatten (free reshape)
    if xb.dtype != jnp.bfloat16:
        xb = xb.astype(jnp.float32)
    xp = x_piece
    if xp.dtype != jnp.bfloat16:
        xp = xp.astype(jnp.float32)

    tb = _pick_row_tile(B)
    grid = (pl.cdiv(B, tb),)

    def rows(shape):
        nd = len(shape)
        return pl.BlockSpec((tb,) + tuple(shape[1:]),
                            lambda i, _nd=nd: (i,) + (0,) * (_nd - 1))

    def whole(shape):
        nd = len(shape)
        return pl.BlockSpec(tuple(shape), lambda i, _nd=nd: (0,) * _nd)

    flops = 2 * B * (BOARD_FLAT * CONV_FLAT + CONV_FLAT * HID + NPIECE * HID + HID * HEAD_PAD)
    weight_bytes = sum(int(np.prod(v.shape)) * v.dtype.itemsize for v in fused.values())
    bytes_accessed = (int(np.prod(xb.shape)) * xb.dtype.itemsize
                      + int(np.prod(xp.shape)) * xp.dtype.itemsize
                      + B * HEAD_PAD * 2                        # bf16 output slab
                      + weight_bytes)
    cost = pl.CostEstimate(flops=flops, transcendentals=0, bytes_accessed=bytes_accessed)

    out = pl.pallas_call(
        _fused_kernel,
        out_shape=jax.ShapeDtypeStruct((B, HEAD_PAD), jnp.bfloat16),
        grid=grid,
        in_specs=[rows(xb.shape), rows(xp.shape),
                  whole(fused["w_exp"].shape), whole(fused["b_exp"].shape),
                  whole(fused["w1a"].shape), whole(fused["w1b"].shape),
                  whole(fused["b1"].shape),
                  whole(fused["w_heads"].shape), whole(fused["b_heads"].shape)],
        out_specs=rows((B, HEAD_PAD)),
        compiler_params=pltpu.CompilerParams(
            dimension_semantics=("parallel",)),                 # shards B-tiles across v7x cores
        cost_estimate=cost,
    )(xb, xp, fused["w_exp"], fused["b_exp"], fused["w1a"], fused["w1b"],
      fused["b1"], fused["w_heads"], fused["b_heads"])

    # Slice the useful 32 columns once, then split (avoids two separate gathers).
    logits = out[:, :2 * NPIECE].astype(jnp.float32)
    return logits[:, :NPIECE], logits[:, NPIECE:]               # board_logits, piece_logits


def quarto_predict(x_board, x_piece, fused, temperature=1.0, deterministic=True):
    """Predict path (argmax). Softmax/argmax kept in JAX glue (cheap vs. kernel)."""
    board_logits, piece_logits = quarto_forward(x_board, x_piece, fused)
    board_probs = jax.nn.softmax(board_logits / temperature, axis=-1)
    # TODO(synk): non-deterministic multinomial sampling path (DETERMINISTIC=False) not implemented.
    board_idx = jnp.argmax(board_probs, axis=-1)                          # (B,)
    board_position = jax.nn.one_hot(board_idx, NPIECE).reshape(-1, H, W)  # (B, 4, 4)
    predicted_piece = jnp.argmax(piece_logits / temperature, axis=-1)     # (B,)
    return board_position, predicted_piece


# --------------------------- param prep (one-time) ----------------------------

def prepare_params(params):
    """Fuse/expand PyTorch-layout params into kernel-ready form (done once).

    NOTE: expects trunk weights already split/transposed into x@W layout as
    w1a (512,128) / w1b (16,128); a real nn.Linear(528,128).weight is (128,528)
    and must be transposed + split with concat order [conv_flat_NCHW | x_piece].
    """
    w = np.asarray(params["w_conv"], np.float32)            # (Cout, Cin, 3, 3) OIHW
    Cout, Cin, KH, KW = w.shape

    # Dense conv weight: rows = NCHW flatten of x_board (cin, hi, wi),
    # cols = NCHW flatten of conv output (cout, ho, wo). Zeros encode SAME padding.
    w_exp = np.zeros((Cin, H, W, Cout, H, W), np.float32)
    for kh in range(KH):
        for kw in range(KW):
            dh, dw = kh - KH // 2, kw - KW // 2
            for ho in range(H):
                hi = ho + dh
                if not 0 <= hi < H:
                    continue
                for wo in range(W):
                    wi = wo + dw
                    if not 0 <= wi < W:
                        continue
                    w_exp[:, hi, wi, :, ho, wo] = w[:, :, kh, kw].T
    w_exp = w_exp.reshape(Cin * H * W, Cout * H * W)         # (256, 512)

    b_exp = np.repeat(np.asarray(params["b_conv"], np.float32), H * W)[None, :]   # (1, 512)

    # Merge the two heads into one zero-padded lane-dense weight/bias.
    w_heads = np.zeros((HID, HEAD_PAD), np.float32)
    w_heads[:, :NPIECE] = np.asarray(params["w_board"], np.float32)
    w_heads[:, NPIECE:2 * NPIECE] = np.asarray(params["w_piece"], np.float32)
    b_heads = np.zeros((1, HEAD_PAD), np.float32)
    b_heads[0, :NPIECE] = np.asarray(params["b_board"], np.float32)
    b_heads[0, NPIECE:2 * NPIECE] = np.asarray(params["b_piece"], np.float32)

    return {
        "w_exp":   jnp.asarray(w_exp, jnp.bfloat16),
        "b_exp":   jnp.asarray(b_exp, jnp.float32),
        "w1a":     jnp.asarray(np.asarray(params["w1a"], np.float32), jnp.bfloat16),
        "w1b":     jnp.asarray(np.asarray(params["w1b"], np.float32), jnp.bfloat16),
        "b1":      jnp.asarray(np.asarray(params["b1"], np.float32).reshape(1, HID), jnp.float32),
        "w_heads": jnp.asarray(w_heads, jnp.bfloat16),
        "b_heads": jnp.asarray(b_heads, jnp.float32),
    }


# --------------------------- deterministic params ----------------------------

def init_params(key):
    ks = jax.random.split(key, 8)

    def he(k, shape, fan_in):
        return (jax.random.normal(k, shape, jnp.float32) * np.sqrt(2.0 / fan_in)).astype(jnp.float32)

    return {
        "w_conv":  he(ks[0], (COUT, CIN, 3, 3), CIN * 9),            # PyTorch OIHW
        "b_conv":  jnp.zeros((COUT,), jnp.float32),
        "w1a":     he(ks[1], (CONV_FLAT, HID), CONV_FLAT + NPIECE),  # acts on NCHW-flattened conv
        "w1b":     he(ks[2], (NPIECE, HID), CONV_FLAT + NPIECE),     # acts on x_piece
        "b1":      jnp.zeros((HID,), jnp.float32),
        "w_board": he(ks[3], (HID, NPIECE), HID),
        "b_board": jnp.zeros((NPIECE,), jnp.float32),
        "w_piece": he(ks[4], (HID, NPIECE), HID),
        "b_piece": jnp.zeros((NPIECE,), jnp.float32),
    }


# ------------------------------ reference check ------------------------------

def reference_forward(x_board, x_piece, params):
    """Pure-JAX reference (PyTorch semantics) with the kernel's bf16 rounding mirrored."""
    bf = lambda t: t.astype(jnp.bfloat16).astype(jnp.float32)   # mimic MXU bf16 inputs, f32 accum
    conv = jax.lax.conv_general_dilated(
        bf(x_board), bf(params["w_conv"]), window_strides=(1, 1), padding="SAME",
        dimension_numbers=("NCHW", "OIHW", "NCHW"))
    conv = jnp.maximum(conv + params["b_conv"].reshape(1, -1, 1, 1), 0.0)
    flat = conv.reshape(x_board.shape[0], -1)                   # NCHW channel-major flatten
    h = bf(flat) @ bf(params["w1a"]) + bf(x_piece) @ bf(params["w1b"]) + params["b1"]
    h = jnp.maximum(h, 0.0)
    board = bf(bf(h) @ bf(params["w_board"]) + params["b_board"])   # kernel stores bf16 output
    piece = bf(bf(h) @ bf(params["w_piece"]) + params["b_piece"])
    return board, piece


def _check(B, key):
    k_board, k_piece, k_param = jax.random.split(key, 3)
    x_board = jax.random.normal(k_board, (B, CIN, H, W), jnp.float32)   # NCHW
    x_piece = jax.random.normal(k_piece, (B, NPIECE), jnp.float32)
    params = init_params(k_param)
    fused = prepare_params(params)

    board_logits, piece_logits = quarto_forward(x_board, x_piece, fused)
    jax.block_until_ready((board_logits, piece_logits))

    ref_board, ref_piece = reference_forward(x_board, x_piece, params)
    np.testing.assert_allclose(np.asarray(board_logits), np.asarray(ref_board), rtol=2e-2, atol=2e-2)
    np.testing.assert_allclose(np.asarray(piece_logits), np.asarray(ref_piece), rtol=2e-2, atol=2e-2)
    return x_board, x_piece, fused


if __name__ == "__main__":
    key = jax.random.PRNGKey(0)

    # Small-batch check (single tile) — matches the module's canonical shapes.
    x_board, x_piece, fused = _check(B=2, key=key)

    # Multi-tile check (exercises >=2 grid steps + masked tail rows).
    _check(B=48, key=jax.random.fold_in(key, 1))

    board_pos, pred_piece = quarto_predict(x_board, x_piece, fused)
    jax.block_until_ready((board_pos, pred_piece))

    print("KERNEL_OK")
</pallas_src>

<mosaic_0001>
module attributes {stable_mosaic.version = 11 : i64} {
  func.func @_fused_kernel(%arg0: i32, %arg1: memref<2x256xf32, #tpu.memory_space<vmem>>, %arg2: memref<2x16xf32, #tpu.memory_space<vmem>>, %arg3: memref<256x512xbf16, #tpu.memory_space<vmem>>, %arg4: memref<1x512xf32, #tpu.memory_space<vmem>>, %arg5: memref<512x128xbf16, #tpu.memory_space<vmem>>, %arg6: memref<16x128xbf16, #tpu.memory_space<vmem>>, %arg7: memref<1x128xf32, #tpu.memory_space<vmem>>, %arg8: memref<128x128xbf16, #tpu.memory_space<vmem>>, %arg9: memref<1x128xf32, #tpu.memory_space<vmem>>, %arg10: memref<2x128xbf16, #tpu.memory_space<vmem>>) attributes {dimension_semantics = [#tpu.dimension_semantics<parallel>], iteration_bounds = array<i64: 1>, scalar_prefetch = 0 : i64, scratch_operands = 0 : i64, tpu.core_type = #tpu.core_type<tc>, window_params = [{transform_indices = @transform_0, window_bounds = array<i64: 2, 256>}, {transform_indices = @transform_1, window_bounds = array<i64: 2, 16>}, {pipeline_mode = #tpu.pipeline_mode<synchronous>, transform_indices = @transform_2, window_bounds = array<i64: 256, 512>}, {pipeline_mode = #tpu.pipeline_mode<synchronous>, transform_indices = @transform_3, window_bounds = array<i64: 1, 512>}, {pipeline_mode = #tpu.pipeline_mode<synchronous>, transform_indices = @transform_4, window_bounds = array<i64: 512, 128>}, {pipeline_mode = #tpu.pipeline_mode<synchronous>, transform_indices = @transform_5, window_bounds = array<i64: 16, 128>}, {pipeline_mode = #tpu.pipeline_mode<synchronous>, transform_indices = @transform_6, window_bounds = array<i64: 1, 128>}, {pipeline_mode = #tpu.pipeline_mode<synchronous>, transform_indices = @transform_7, window_bounds = array<i64: 128, 128>}, {pipeline_mode = #tpu.pipeline_mode<synchronous>, transform_indices = @transform_8, window_bounds = array<i64: 1, 128>}, {transform_indices = @transform_9, window_bounds = array<i64: 2, 128>}]} {
    %c0 = arith.constant 0 : index
    %c0_0 = arith.constant 0 : index
    %0 = vector.load %arg1[%c0, %c0_0] : memref<2x256xf32, #tpu.memory_space<vmem>>, vector<2x256xf32>
    %1 = arith.truncf %0 : vector<2x256xf32> to vector<2x256xbf16>
    %c0_1 = arith.constant 0 : index
    %c0_2 = arith.constant 0 : index
    %2 = vector.load %arg2[%c0_1, %c0_2] : memref<2x16xf32, #tpu.memory_space<vmem>>, vector<2x16xf32>
    %3 = arith.truncf %2 : vector<2x16xf32> to vector<2x16xbf16>
    %c0_3 = arith.constant 0 : index
    %c0_4 = arith.constant 0 : index
    %4 = vector.load %arg3[%c0_3, %c0_4] : memref<256x512xbf16, #tpu.memory_space<vmem>>, vector<256x512xbf16>
    %cst = arith.constant dense<0.000000e+00> : vector<2x512xf32>
    %5 = tpu.matmul %1, %4, %cst {dimension_numbers = #tpu.dot_dimension_numbers<[1], [0], [0], [1], [0, 0, 1, 1], [], []>} : vector<2x256xbf16>, vector<256x512xbf16>, vector<2x512xf32> -> vector<2x512xf32>
    %c0_5 = arith.constant 0 : index
    %c0_6 = arith.constant 0 : index
    %6 = vector.load %arg4[%c0_5, %c0_6] : memref<1x512xf32, #tpu.memory_space<vmem>>, vector<1x512xf32>
    %7 = vector.broadcast %6 : vector<1x512xf32> to vector<2x512xf32>
    %8 = arith.addf %5, %7 : vector<2x512xf32>
    %cst_7 = arith.constant 0.000000e+00 : f32
    %9 = vector.broadcast %cst_7 : f32 to vector<2x512xf32>
    %10 = arith.maximumf %8, %9 : vector<2x512xf32>
    %11 = arith.truncf %10 : vector<2x512xf32> to vector<2x512xbf16>
    %c0_8 = arith.constant 0 : index
    %c0_9 = arith.constant 0 : index
    %12 = vector.load %arg5[%c0_8, %c0_9] : memref<512x128xbf16, #tpu.memory_space<vmem>>, vector<512x128xbf16>
    %cst_10 = arith.constant dense<0.000000e+00> : vector<2x128xf32>
    %13 = tpu.matmul %11, %12, %cst_10 {dimension_numbers = #tpu.dot_dimension_numbers<[1], [0], [0], [1], [0, 0, 1, 1], [], []>} : vector<2x512xbf16>, vector<512x128xbf16>, vector<2x128xf32> -> vector<2x128xf32>
    %c0_11 = arith.constant 0 : index
    %c0_12 = arith.constant 0 : index
    %14 = vector.load %arg6[%c0_11, %c0_12] : memref<16x128xbf16, #tpu.memory_space<vmem>>, vector<16x128xbf16>
    %cst_13 = arith.constant dense<0.000000e+00> : vector<2x128xf32>
    %15 = tpu.matmul %3, %14, %cst_13 {dimension_numbers = #tpu.dot_dimension_numbers<[1], [0], [0], [1], [0, 0, 1, 1], [], []>} : vector<2x16xbf16>, vector<16x128xbf16>, vector<2x128xf32> -> vector<2x128xf32>
    %16 = arith.addf %13, %15 : vector<2x128xf32>
    %c0_14 = arith.constant 0 : index
    %c0_15 = arith.constant 0 : index
    %17 = vector.load %arg7[%c0_14, %c0_15] : memref<1x128xf32, #tpu.memory_space<vmem>>, vector<1x128xf32>
    %18 = vector.broadcast %17 : vector<1x128xf32> to vector<2x128xf32>
    %19 = arith.addf %16, %18 : vector<2x128xf32>
    %cst_16 = arith.constant 0.000000e+00 : f32
    %20 = vector.broadcast %cst_16 : f32 to vector<2x128xf32>
    %21 = arith.maximumf %19, %20 : vector<2x128xf32>
    %22 = arith.truncf %21 : vector<2x128xf32> to vector<2x128xbf16>
    %c0_17 = arith.constant 0 : index
    %c0_18 = arith.constant 0 : index
    %23 = vector.load %arg8[%c0_17, %c0_18] : memref<128x128xbf16, #tpu.memory_space<vmem>>, vector<128x128xbf16>
    %cst_19 = arith.constant dense<0.000000e+00> : vector<2x128xf32>
    %24 = tpu.matmul %22, %23, %cst_19 {dimension_numbers = #tpu.dot_dimension_numbers<[1], [0], [0], [1], [0, 0, 1, 1], [], []>} : vector<2x128xbf16>, vector<128x128xbf16>, vector<2x128xf32> -> vector<2x128xf32>
    %c0_20 = arith.constant 0 : index
    %c0_21 = arith.constant 0 : index
    %25 = vector.load %arg9[%c0_20, %c0_21] : memref<1x128xf32, #tpu.memory_space<vmem>>, vector<1x128xf32>
    %26 = vector.broadcast %25 : vector<1x128xf32> to vector<2x128xf32>
    %27 = arith.addf %24, %26 : vector<2x128xf32>
    %28 = arith.truncf %27 : vector<2x128xf32> to vector<2x128xbf16>
    %c0_22 = arith.constant 0 : index
    %c0_23 = arith.constant 0 : index
    %29 = vector.load %arg10[%c0_22, %c0_23] : memref<2x128xbf16, #tpu.memory_space<vmem>>, vector<2x128xbf16>
    tpu.vector_store %arg10[%c0_22, %c0_23], %28 {strides = array<i32>} : memref<2x128xbf16, #tpu.memory_space<vmem>>, vector<2x128xbf16>,
    return
  }
  func.func @transform_0(%arg0: i32) -> (i32, i32) {
    %c0_i32 = arith.constant 0 : i32
    %c0_i32_0 = arith.constant 0 : i32
    return %arg0, %c0_i32 : i32, i32
  }
  func.func @transform_1(%arg0: i32) -> (i32, i32) {
    %c0_i32 = arith.constant 0 : i32
    %c0_i32_0 = arith.constant 0 : i32
    return %arg0, %c0_i32 : i32, i32
  }
  func.func @transform_2(%arg0: i32) -> (i32, i32) {
    %c0_i32 = arith.constant 0 : i32
    %c0_i32_0 = arith.constant 0 : i32
    %c0_i32_1 = arith.constant 0 : i32
    return %c0_i32, %c0_i32_0 : i32, i32
  }
  func.func @transform_3(%arg0: i32) -> (i32, i32) {
    %c0_i32 = arith.constant 0 : i32
    %c0_i32_0 = arith.constant 0 : i32
    %c0_i32_1 = arith.constant 0 : i32
    return %c0_i32, %c0_i32_0 : i32, i32
  }
  func.func @transform_4(%arg0: i32) -> (i32, i32) {
    %c0_i32 = arith.constant 0 : i32
    %c0_i32_0 = arith.constant 0 : i32
    %c0_i32_1 = arith.constant 0 : i32
    return %c0_i32, %c0_i32_0 : i32, i32
  }
  func.func @transform_5(%arg0: i32) -> (i32, i32) {
    %c0_i32 = arith.constant 0 : i32
    %c0_i32_0 = arith.constant 0 : i32
    %c0_i32_1 = arith.constant 0 : i32
    return %c0_i32, %c0_i32_0 : i32, i32
  }
  func.func @transform_6(%arg0: i32) -> (i32, i32) {
    %c0_i32 = arith.constant 0 : i32
    %c0_i32_0 = arith.constant 0 : i32
    %c0_i32_1 = arith.constant 0 : i32
    return %c0_i32, %c0_i32_0 : i32, i32
  }
  func.func @transform_7(%arg0: i32) -> (i32, i32) {
    %c0_i32 = arith.constant 0 : i32
    %c0_i32_0 = arith.constant 0 : i32
    %c0_i32_1 = arith.constant 0 : i32
    return %c0_i32, %c0_i32_0 : i32, i32
  }
  func.func @transform_8(%arg0: i32) -> (i32, i32) {
    %c0_i32 = arith.constant 0 : i32
    %c0_i32_0 = arith.constant 0 : i32
    %c0_i32_1 = arith.constant 0 : i32
    return %c0_i32, %c0_i32_0 : i32, i32
  }
  func.func @transform_9(%arg0: i32) -> (i32, i32) {
    %c0_i32 = arith.constant 0 : i32
    %c0_i32_0 = arith.constant 0 : i32
    return %arg0, %c0_i32 : i32, i32
  }
}

</mosaic_0001>

<llo_original>
// kernel: quarto_forward.1
$region0: #{quarto_forward.1}
  #allocation0 [shape = 'u32[]', space=smem, size = 0x4, offset = 0x4, fixed_abs, tag = 'smem constant byte address 0x4 - core index']
  #allocation1 [shape = 'u32[144,128]{1,0:T(1,128)}', space=vmem, size = 0x12000, scoped, tag = 'internal scratch']
  %s0 = inlined_call_operand.vmem [shape: f32[2,256], index: 0, kind: input, shape index: {}]
  %s1 = inlined_call_operand.vmem [shape: f32[2,16], index: 1, kind: input, shape index: {}]
  %s2 = inlined_call_operand.hbm [shape: bf16[256,512], index: 2, kind: input, shape index: {}]
  %s3 = inlined_call_operand.hbm [shape: f32[1,512], index: 3, kind: input, shape index: {}]
  %s4 = inlined_call_operand.vmem [shape: bf16[512,128], index: 4, kind: input, shape index: {}]
  %s5 = inlined_call_operand.hbm [shape: bf16[16,128], index: 5, kind: input, shape index: {}]
  %s6 = inlined_call_operand.hbm [shape: f32[1,128], index: 6, kind: input, shape index: {}]
  %s7 = inlined_call_operand.vmem [shape: bf16[128,128], index: 7, kind: input, shape index: {}]
  %s8 = inlined_call_operand.hbm [shape: f32[1,128], index: 8, kind: input, shape index: {}]
  %s9 = inlined_call_operand.vmem [shape: bf16[2,128], index: 9, kind: output, shape index: {}]
  %s10 = sld [smem:[#allocation0]]
  $region66: #{quarto_forward.1} parent=0
    _
  %s12 = ssub.s32 1, %s10
  %s13 = scalar_select 0, %s12, %s10
  $region1: #{quarto_forward.1} parent=0
    #allocation2 [shape = 'u8[262144]{0}', space=vmem, size = 0x40000, scoped, tag = 'input window, operand 2, single buffered']
    #allocation3 [shape = 's32[1]{0}', space=sflag, size = 0x4, scoped, tag = 'scoped memory for quarto_forward.1']
    #allocation4 [shape = 'u8[2048]{0}', space=vmem, size = 0x800, scoped, tag = 'input window, operand 3, single buffered']
    #allocation5 [shape = 's32[1]{0}', space=sflag, size = 0x4, scoped, tag = 'scoped memory for quarto_forward.1']
    #allocation6 [shape = 'u8[4096]{0}', space=vmem, size = 0x1000, scoped, tag = 'input window, operand 5, single buffered']
    #allocation7 [shape = 'u8[512]{0}', space=vmem, size = 0x400, scoped, tag = 'input window, operand 6, single buffered']
    #allocation8 [shape = 's32[1]{0}', space=sflag, size = 0x4, scoped, tag = 'scoped memory for quarto_forward.1']
    #allocation9 [shape = 'u8[512]{0}', space=vmem, size = 0x400, scoped, tag = 'input window, operand 8, single buffered']
    %14 = vsyncpa [#allocation3], 0
    %15 = vsyncpa [#allocation5], 0
    %16 = vsyncpa [#allocation8], 0
    // Predicated region
    $region2: #{quarto_forward.1} parent=1 // pred_check
      _
    $region3: #{quarto_forward.1} parent=1 // pred_check_branch
      %18 = sbr.rel (0) target = $region5
    $region4: #{quarto_forward.1} parent=1 // pred_region
      _
    $region5: #{quarto_forward.1} parent=1 // pred_fallthru
      _
    // Predicated region
    $region6: #{quarto_forward.1} parent=1 // pred_check
      _
    $region7: #{quarto_forward.1} parent=1 // pred_check_branch
      %20 = sbr.rel (0) target = $region9
    $region8: #{quarto_forward.1} parent=1 // pred_region
      _
    $region9: #{quarto_forward.1} parent=1 // pred_fallthru
      _
    // Predicated region
    $region10: #{quarto_forward.1} parent=1 // pred_check
      _
    $region11: #{quarto_forward.1} parent=1 // pred_check_branch
      %22 = sbr.rel (0) target = $region13
    $region12: #{quarto_forward.1} parent=1 // pred_region
      %s24 = ssub.s32 8192, 8192
      %25 = vsyncadd [#allocation3], %s24
      %s26 = sshll.u32 [#allocation2], 4
      %s27 = int_to_ptr.vmem [resolvable:$true] %s26
      %32 = dma.hbm_to_vmem [thread:$0]  %s2, 8192, %s27, [#allocation3], 256, 256, 16
    $region13: #{quarto_forward.1} parent=1 // pred_fallthru
      _
    // Predicated region
    $region14: #{quarto_forward.1} parent=1 // pred_check
      _
    $region15: #{quarto_forward.1} parent=1 // pred_check_branch
      %34 = sbr.rel (0) target = $region17
    $region16: #{quarto_forward.1} parent=1 // pred_region
      %s36 = ssub.s32 64, 64
      %37 = vsyncadd [#allocation5], %s36
      %s39 = sshll.u32 [#allocation4], 4
      %s40 = int_to_ptr.vmem [resolvable:$true] %s39
      %42 = dma.hbm_to_vmem [thread:$0]  %s3, 64, %s40, [#allocation5]
    $region17: #{quarto_forward.1} parent=1 // pred_fallthru
      _
    // Predicated region
    $region18: #{quarto_forward.1} parent=1 // pred_check
      _
    $region19: #{quarto_forward.1} parent=1 // pred_check_branch
      %44 = sbr.rel (0) target = $region21
    $region20: #{quarto_forward.1} parent=1 // pred_region
      _
    $region21: #{quarto_forward.1} parent=1 // pred_fallthru
      _
    // Predicated region
    $region22: #{quarto_forward.1} parent=1 // pred_check
      _
    $region23: #{quarto_forward.1} parent=1 // pred_check_branch
      %46 = sbr.rel (0) target = $region25
    $region24: #{quarto_forward.1} parent=1 // pred_region
      %s48 = ssub.s32 128, 128
      %49 = vsyncadd [#allocation5], %s48
      %s50 = sshll.u32 [#allocation6], 4
      %s51 = int_to_ptr.vmem [resolvable:$true] %s50
      %56 = dma.hbm_to_vmem [thread:$0]  %s5, 128, %s51, [#allocation5], 64, 64, 4
    $region25: #{quarto_forward.1} parent=1 // pred_fallthru
      _
    // Predicated region
    $region26: #{quarto_forward.1} parent=1 // pred_check
      _
    $region27: #{quarto_forward.1} parent=1 // pred_check_branch
      %58 = sbr.rel (0) target = $region29
    $region28: #{quarto_forward.1} parent=1 // pred_region
      %s60 = ssub.s32 16, 16
      %61 = vsyncadd [#allocation8], %s60
      %s63 = sshll.u32 [#allocation7], 4
      %s64 = int_to_ptr.vmem [resolvable:$true] %s63
      %66 = dma.hbm_to_vmem [thread:$0]  %s6, 16, %s64, [#allocation8]
    $region29: #{quarto_forward.1} parent=1 // pred_fallthru
      _
    // Predicated region
    $region30: #{quarto_forward.1} parent=1 // pred_check
      _
    $region31: #{quarto_forward.1} parent=1 // pred_check_branch
      %68 = sbr.rel (0) target = $region33
    $region32: #{quarto_forward.1} parent=1 // pred_region
      _
    $region33: #{quarto_forward.1} parent=1 // pred_fallthru
      _
    // Predicated region
    $region34: #{quarto_forward.1} parent=1 // pred_check
      _
    $region35: #{quarto_forward.1} parent=1 // pred_check_branch
      %70 = sbr.rel (0) target = $region37
    $region36: #{quarto_forward.1} parent=1 // pred_region
      %s72 = ssub.s32 16, 16
      %73 = vsyncadd [#allocation8], %s72
      %s75 = sshll.u32 [#allocation9], 4
      %s76 = int_to_ptr.vmem [resolvable:$true] %s75
      %78 = dma.hbm_to_vmem [thread:$0]  %s8, 16, %s76, [#allocation8]
    $region37: #{quarto_forward.1} parent=1 // pred_fallthru
      _
    // Predicated region
    $region38: #{quarto_forward.1} parent=1 // pred_check
      _
    $region39: #{quarto_forward.1} parent=1 // pred_check_branch
      %80 = sbr.rel (0) target = $region41
    $region40: #{quarto_forward.1} parent=1 // pred_region
      %81 = dma.done [#allocation3], 8192
    $region41: #{quarto_forward.1} parent=1 // pred_fallthru
      _
    // Predicated region
    $region42: #{quarto_forward.1} parent=1 // pred_check
      _
    $region43: #{quarto_forward.1} parent=1 // pred_check_branch
      %83 = sbr.rel (0) target = $region45
    $region44: #{quarto_forward.1} parent=1 // pred_region
      %84 = dma.done [#allocation5], 64
    $region45: #{quarto_forward.1} parent=1 // pred_fallthru
      _
    // Predicated region
    $region46: #{quarto_forward.1} parent=1 // pred_check
      _
    $region47: #{quarto_forward.1} parent=1 // pred_check_branch
      %86 = sbr.rel (0) target = $region49
    $region48: #{quarto_forward.1} parent=1 // pred_region
      %87 = dma.done [#allocation5], 128
    $region49: #{quarto_forward.1} parent=1 // pred_fallthru
      _
    // Predicated region
    $region50: #{quarto_forward.1} parent=1 // pred_check
      _
    $region51: #{quarto_forward.1} parent=1 // pred_check_branch
      %89 = sbr.rel (0) target = $region53
    $region52: #{quarto_forward.1} parent=1 // pred_region
      %90 = dma.done [#allocation8], 16
    $region53: #{quarto_forward.1} parent=1 // pred_fallthru
      _
    // Predicated region
    $region54: #{quarto_forward.1} parent=1 // pred_check
      _
    $region55: #{quarto_forward.1} parent=1 // pred_check_branch
      %92 = sbr.rel (0) target = $region57
    $region56: #{quarto_forward.1} parent=1 // pred_region
      %93 = dma.done [#allocation8], 16
    $region57: #{quarto_forward.1} parent=1 // pred_fallthru
      _
    %v95 = vld [vmem:[%s0] sm:$0xf]
    %v98 = vunpack.c.l.s4 1983009808
    %v99 = vunpack.c.0.s8 %v98
    %v100 = vlaneseq
    %v101 = vshrl.u32 %v100, 7
    %v102 = vsub.s32 %v99, %v101
    %v103 = vrot.slane %v95, %v102
    %v104 = vcombine.high %v103, %v103
    %v107 = vpack.c.bf16 %v103, %v103
    %v108 = vpack.c.bf16 %v104, %v104
    %v109 = vld [vmem:[%s1] sm:$0x3]
    %v110 = vpack.c.bf16 %v109, %v109
    %v111 = vld [vmem:[#allocation2] sm:$0xff]
    %v112 = vld [vmem:[#allocation2 + $0x8] sm:$0xff]
    %v113 = vld [vmem:[#allocation2 + $0x10] sm:$0xff]
    %v114 = vld [vmem:[#allocation2 + $0x18] sm:$0xff]
    %v115 = vld [vmem:[#allocation2 + $0x20] sm:$0xff]
    %v116 = vld [vmem:[#allocation2 + $0x28] sm:$0xff]
    %v117 = vld [vmem:[#allocation2 + $0x30] sm:$0xff]
    %v118 = vld [vmem:[#allocation2 + $0x38] sm:$0xff]
    %v119 = vld [vmem:[#allocation2 + $0x40] sm:$0xff]
    %v120 = vld [vmem:[#allocation2 + $0x48] sm:$0xff]
    %v121 = vld [vmem:[#allocation2 + $0x50] sm:$0xff]
    %v122 = vld [vmem:[#allocation2 + $0x58] sm:$0xff]
    %v123 = vld [vmem:[#allocation2 + $0x60] sm:$0xff]
    %v124 = vld [vmem:[#allocation2 + $0x68] sm:$0xff]
    %v125 = vld [vmem:[#allocation2 + $0x70] sm:$0xff]
    %v126 = vld [vmem:[#allocation2 + $0x78] sm:$0xff]
    %v127 = vld [vmem:[#allocation2 + $0x80] sm:$0xff]
    %v128 = vld [vmem:[#allocation2 + $0x88] sm:$0xff]
    %v129 = vld [vmem:[#allocation2 + $0x90] sm:$0xff]
    %v130 = vld [vmem:[#allocation2 + $0x98] sm:$0xff]
    %v131 = vld [vmem:[#allocation2 + $0xa0] sm:$0xff]
    %v132 = vld [vmem:[#allocation2 + $0xa8] sm:$0xff]
    %v133 = vld [vmem:[#allocation2 + $0xb0] sm:$0xff]
    %v134 = vld [vmem:[#allocation2 + $0xb8] sm:$0xff]
    %v135 = vld [vmem:[#allocation2 + $0xc0] sm:$0xff]
    %v136 = vld [vmem:[#allocation2 + $0xc8] sm:$0xff]
    %v137 = vld [vmem:[#allocation2 + $0xd0] sm:$0xff]
    %v138 = vld [vmem:[#allocation2 + $0xd8] sm:$0xff]
    %v139 = vld [vmem:[#allocation2 + $0xe0] sm:$0xff]
    %v140 = vld [vmem:[#allocation2 + $0xe8] sm:$0xff]
    %v141 = vld [vmem:[#allocation2 + $0xf0] sm:$0xff]
    %v142 = vld [vmem:[#allocation2 + $0xf8] sm:$0xff]
    %v143 = vld [vmem:[#allocation2 + $0x100] sm:$0xff]
    %v144 = vld [vmem:[#allocation2 + $0x108] sm:$0xff]
    %v145 = vld [vmem:[#allocation2 + $0x110] sm:$0xff]
    %v146 = vld [vmem:[#allocation2 + $0x118] sm:$0xff]
    %v147 = vld [vmem:[#allocation2 + $0x120] sm:$0xff]
    %v148 = vld [vmem:[#allocation2 + $0x128] sm:$0xff]
    %v149 = vld [vmem:[#allocation2 + $0x130] sm:$0xff]
    %v150 = vld [vmem:[#allocation2 + $0x138] sm:$0xff]
    %v151 = vld [vmem:[#allocation2 + $0x140] sm:$0xff]
    %v152 = vld [vmem:[#allocation2 + $0x148] sm:$0xff]
    %v153 = vld [vmem:[#allocation2 + $0x150] sm:$0xff]
    %v154 = vld [vmem:[#allocation2 + $0x158] sm:$0xff]
    %v155 = vld [vmem:[#allocation2 + $0x160] sm:$0xff]
    %v156 = vld [vmem:[#allocation2 + $0x168] sm:$0xff]
    %v157 = vld [vmem:[#allocation2 + $0x170] sm:$0xff]
    %v158 = vld [vmem:[#allocation2 + $0x178] sm:$0xff]
    %v159 = vld [vmem:[#allocation2 + $0x180] sm:$0xff]
    %v160 = vld [vmem:[#allocation2 + $0x188] sm:$0xff]
    %v161 = vld [vmem:[#allocation2 + $0x190] sm:$0xff]
    %v162 = vld [vmem:[#allocation2 + $0x198] sm:$0xff]
    %v163 = vld [vmem:[#allocation2 + $0x1a0] sm:$0xff]
    %v164 = vld [vmem:[#allocation2 + $0x1a8] sm:$0xff]
    %v165 = vld [vmem:[#allocation2 + $0x1b0] sm:$0xff]
    %v166 = vld [vmem:[#allocation2 + $0x1b8] sm:$0xff]
    %v167 = vld [vmem:[#allocation2 + $0x1c0] sm:$0xff]
    %v168 = vld [vmem:[#allocation2 + $0x1c8] sm:$0xff]
    %v169 = vld [vmem:[#allocation2 + $0x1d0] sm:$0xff]
    %v170 = vld [vmem:[#allocation2 + $0x1d8] sm:$0xff]
    %v171 = vld [vmem:[#allocation2 + $0x1e0] sm:$0xff]
    %v172 = vld [vmem:[#allocation2 + $0x1e8] sm:$0xff]
    %v173 = vld [vmem:[#allocation2 + $0x1f0] sm:$0xff]
    %v174 = vld [vmem:[#allocation2 + $0x1f8] sm:$0xff]
    %v175 = vld [vmem:[#allocation4] sm:$0xf]
    %v177 = vlaneseq
    %v178 = vshrl.u32 %v177, 7
    %v179 = vsub.s32 0, %v178
    %v180 = vrot.slane %v175, %v179
    %v181 = vlaneseq
    %v182 = vshrl.u32 %v181, 7
    %v183 = vsub.s32 1, %v182
    %v184 = vrot.slane %v175, %v183
    %v185 = vlaneseq
    %v186 = vshrl.u32 %v185, 7
    %v187 = vsub.s32 2, %v186
    %v188 = vrot.slane %v175, %v187
    %v189 = vlaneseq
    %v190 = vshrl.u32 %v189, 7
    %v191 = vsub.s32 3, %v190
    %v192 = vrot.slane %v175, %v191
    %v261 = vunpack.c.l.b16 %v111
    %v262 = vunpack.c.h.b16 %v111
    %v263 = vunpack.c.l.b16 %v112
    %v264 = vunpack.c.h.b16 %v112
    %v265 = vunpack.c.l.b16 %v113
    %v266 = vunpack.c.h.b16 %v113
    %v267 = vunpack.c.l.b16 %v114
    %v268 = vunpack.c.h.b16 %v114
    %v269 = vunpack.c.l.b16 %v115
    %v270 = vunpack.c.h.b16 %v115
    %v271 = vunpack.c.l.b16 %v116
    %v272 = vunpack.c.h.b16 %v116
    %v273 = vunpack.c.l.b16 %v117
    %v274 = vunpack.c.h.b16 %v117
    %v275 = vunpack.c.l.b16 %v118
    %v276 = vunpack.c.h.b16 %v118
    %v277 = vunpack.c.l.b16 %v119
    %v278 = vunpack.c.h.b16 %v119
    %v279 = vunpack.c.l.b16 %v120
    %v280 = vunpack.c.h.b16 %v120
    %v281 = vunpack.c.l.b16 %v121
    %v282 = vunpack.c.h.b16 %v121
    %v283 = vunpack.c.l.b16 %v122
    %v284 = vunpack.c.h.b16 %v122
    %v285 = vunpack.c.l.b16 %v123
    %v286 = vunpack.c.h.b16 %v123
    %v287 = vunpack.c.l.b16 %v124
    %v288 = vunpack.c.h.b16 %v124
    %v289 = vunpack.c.l.b16 %v125
    %v290 = vunpack.c.h.b16 %v125
    %v291 = vunpack.c.l.b16 %v126
    %v292 = vunpack.c.h.b16 %v126
    %v293 = vunpack.c.l.b16 %v127
    %v294 = vunpack.c.h.b16 %v127
    %v295 = vunpack.c.l.b16 %v128
    %v296 = vunpack.c.h.b16 %v128
    %v297 = vunpack.c.l.b16 %v129
    %v298 = vunpack.c.h.b16 %v129
    %v299 = vunpack.c.l.b16 %v130
    %v300 = vunpack.c.h.b16 %v130
    %v301 = vunpack.c.l.b16 %v131
    %v302 = vunpack.c.h.b16 %v131
    %v303 = vunpack.c.l.b16 %v132
    %v304 = vunpack.c.h.b16 %v132
    %v305 = vunpack.c.l.b16 %v133
    %v306 = vunpack.c.h.b16 %v133
    %v307 = vunpack.c.l.b16 %v134
    %v308 = vunpack.c.h.b16 %v134
    %v309 = vunpack.c.l.b16 %v135
    %v310 = vunpack.c.h.b16 %v135
    %v311 = vunpack.c.l.b16 %v136
    %v312 = vunpack.c.h.b16 %v136
    %v313 = vunpack.c.l.b16 %v137
    %v314 = vunpack.c.h.b16 %v137
    %v315 = vunpack.c.l.b16 %v138
    %v316 = vunpack.c.h.b16 %v138
    %v317 = vunpack.c.l.b16 %v139
    %v318 = vunpack.c.h.b16 %v139
    %v319 = vunpack.c.l.b16 %v140
    %v320 = vunpack.c.h.b16 %v140
    %v321 = vunpack.c.l.b16 %v141
    %v322 = vunpack.c.h.b16 %v141
    %v323 = vunpack.c.l.b16 %v142
    %v324 = vunpack.c.h.b16 %v142
    %v325 = vunpack.c.l.b16 %v143
    %v326 = vunpack.c.h.b16 %v143
    %v327 = vunpack.c.l.b16 %v144
    %v328 = vunpack.c.h.b16 %v144
    %v329 = vunpack.c.l.b16 %v145
    %v330 = vunpack.c.h.b16 %v145
    %v331 = vunpack.c.l.b16 %v146
    %v332 = vunpack.c.h.b16 %v146
    %v333 = vunpack.c.l.b16 %v147
    %v334 = vunpack.c.h.b16 %v147
    %v335 = vunpack.c.l.b16 %v148
    %v336 = vunpack.c.h.b16 %v148
    %v337 = vunpack.c.l.b16 %v149
    %v338 = vunpack.c.h.b16 %v149
    %v339 = vunpack.c.l.b16 %v150
    %v340 = vunpack.c.h.b16 %v150
    %v341 = vunpack.c.l.b16 %v151
    %v342 = vunpack.c.h.b16 %v151
    %v343 = vunpack.c.l.b16 %v152
    %v344 = vunpack.c.h.b16 %v152
    %v345 = vunpack.c.l.b16 %v153
    %v346 = vunpack.c.h.b16 %v153
    %v347 = vunpack.c.l.b16 %v154
    %v348 = vunpack.c.h.b16 %v154
    %v349 = vunpack.c.l.b16 %v155
    %v350 = vunpack.c.h.b16 %v155
    %v351 = vunpack.c.l.b16 %v156
    %v352 = vunpack.c.h.b16 %v156
    %v353 = vunpack.c.l.b16 %v157
    %v354 = vunpack.c.h.b16 %v157
    %v355 = vunpack.c.l.b16 %v158
    %v356 = vunpack.c.h.b16 %v158
    %v357 = vunpack.c.l.b16 %v159
    %v358 = vunpack.c.h.b16 %v159
    %v359 = vunpack.c.l.b16 %v160
    %v360 = vunpack.c.h.b16 %v160
    %v361 = vunpack.c.l.b16 %v161
    %v362 = vunpack.c.h.b16 %v161
    %v363 = vunpack.c.l.b16 %v162
    %v364 = vunpack.c.h.b16 %v162
    %v365 = vunpack.c.l.b16 %v163
    %v366 = vunpack.c.h.b16 %v163
    %v367 = vunpack.c.l.b16 %v164
    %v368 = vunpack.c.h.b16 %v164
    %v369 = vunpack.c.l.b16 %v165
    %v370 = vunpack.c.h.b16 %v165
    %v371 = vunpack.c.l.b16 %v166
    %v372 = vunpack.c.h.b16 %v166
    %v373 = vunpack.c.l.b16 %v167
    %v374 = vunpack.c.h.b16 %v167
    %v375 = vunpack.c.l.b16 %v168
    %v376 = vunpack.c.h.b16 %v168
    %v377 = vunpack.c.l.b16 %v169
    %v378 = vunpack.c.h.b16 %v169
    %v379 = vunpack.c.l.b16 %v170
    %v380 = vunpack.c.h.b16 %v170
    %v381 = vunpack.c.l.b16 %v171
    %v382 = vunpack.c.h.b16 %v171
    %v383 = vunpack.c.l.b16 %v172
    %v384 = vunpack.c.h.b16 %v172
    %v385 = vunpack.c.l.b16 %v173
    %v386 = vunpack.c.h.b16 %v173
    %v387 = vunpack.c.l.b16 %v174
    %v388 = vunpack.c.h.b16 %v174
    %v389 = vpack.c.b16 %v265, %v261
    %v390 = vpack.c.b16 %v266, %v262
    %v391 = vpack.c.b16 %v267, %v263
    %v392 = vpack.c.b16 %v268, %v264
    %v393 = vpack.c.b16 %v273, %v269
    %v394 = vpack.c.b16 %v274, %v270
    %v395 = vpack.c.b16 %v275, %v271
    %v396 = vpack.c.b16 %v276, %v272
    %v397 = vpack.c.b16 %v281, %v277
    %v398 = vpack.c.b16 %v282, %v278
    %v399 = vpack.c.b16 %v283, %v279
    %v400 = vpack.c.b16 %v284, %v280
    %v401 = vpack.c.b16 %v289, %v285
    %v402 = vpack.c.b16 %v290, %v286
    %v403 = vpack.c.b16 %v291, %v287
    %v404 = vpack.c.b16 %v292, %v288
    %v405 = vpack.c.b16 %v297, %v293
    %v406 = vpack.c.b16 %v298, %v294
    %v407 = vpack.c.b16 %v299, %v295
    %v408 = vpack.c.b16 %v300, %v296
    %v409 = vpack.c.b16 %v305, %v301
    %v410 = vpack.c.b16 %v306, %v302
    %v411 = vpack.c.b16 %v307, %v303
    %v412 = vpack.c.b16 %v308, %v304
    %v413 = vpack.c.b16 %v313, %v309
    %v414 = vpack.c.b16 %v314, %v310
    %v415 = vpack.c.b16 %v315, %v311
    %v416 = vpack.c.b16 %v316, %v312
    %v417 = vpack.c.b16 %v321, %v317
    %v418 = vpack.c.b16 %v322, %v318
    %v419 = vpack.c.b16 %v323, %v319
    %v420 = vpack.c.b16 %v324, %v320
    %v421 = vpack.c.b16 %v329, %v325
    %v422 = vpack.c.b16 %v330, %v326
    %v423 = vpack.c.b16 %v331, %v327
    %v424 = vpack.c.b16 %v332, %v328
    %v425 = vpack.c.b16 %v337, %v333
    %v426 = vpack.c.b16 %v338, %v334
    %v427 = vpack.c.b16 %v339, %v335
    %v428 = vpack.c.b16 %v340, %v336
    %v429 = vpack.c.b16 %v345, %v341
    %v430 = vpack.c.b16 %v346, %v342
    %v431 = vpack.c.b16 %v347, %v343
    %v432 = vpack.c.b16 %v348, %v344
    %v433 = vpack.c.b16 %v353, %v349
    %v434 = vpack.c.b16 %v354, %v350
    %v435 = vpack.c.b16 %v355, %v351
    %v436 = vpack.c.b16 %v356, %v352
    %v437 = vpack.c.b16 %v361, %v357
    %v438 = vpack.c.b16 %v362, %v358
    %v439 = vpack.c.b16 %v363, %v359
    %v440 = vpack.c.b16 %v364, %v360
    %v441 = vpack.c.b16 %v369, %v365
    %v442 = vpack.c.b16 %v370, %v366
    %v443 = vpack.c.b16 %v371, %v367
    %v444 = vpack.c.b16 %v372, %v368
    %v445 = vpack.c.b16 %v377, %v373
    %v446 = vpack.c.b16 %v378, %v374
    %v447 = vpack.c.b16 %v379, %v375
    %v448 = vpack.c.b16 %v380, %v376
    %v449 = vpack.c.b16 %v385, %v381
    %v450 = vpack.c.b16 %v386, %v382
    %v451 = vpack.c.b16 %v387, %v383
    %v452 = vpack.c.b16 %v388, %v384
    %517 = vmatprep.subr.bf16.mxu0 %v390
    %518 = vmatpush1.bf16.msra.mxu0 %v389
    %519 = vmatprep.subr.bf16.mxu0 %v394
    %520 = vmatpush1.bf16.msra.mxu0 %v393
    %521 = vmatprep.subr.bf16.mxu0 %v398
    %522 = vmatpush1.bf16.msra.mxu0 %v397
    %523 = vmatprep.subr.bf16.mxu0 %v402
    %524 = vmatpush1.bf16.msra.mxu0 %v401
    %525 = vmatprep.subr.bf16.mxu0 %v406
    %526 = vmatpush1.bf16.msra.mxu0 %v405
    %527 = vmatprep.subr.bf16.mxu0 %v410
    %528 = vmatpush1.bf16.msra.mxu0 %v409
    %529 = vmatprep.subr.bf16.mxu0 %v414
    %530 = vmatpush1.bf16.msra.mxu0 %v413
    %531 = vmatprep.subr.bf16.mxu0 %v418
    %532 = vmatpush1.bf16.msra.mxu0 %v417
    %533 = vmatprep.subr.bf16.mxu0 %v422
    %534 = vmatpush1.bf16.msra.mxu0 %v421
    %535 = vmatprep.subr.bf16.mxu0 %v426
    %536 = vmatpush1.bf16.msra.mxu0 %v425
    %537 = vmatprep.subr.bf16.mxu0 %v430
    %538 = vmatpush1.bf16.msra.mxu0 %v429
    %539 = vmatprep.subr.bf16.mxu0 %v434
    %540 = vmatpush1.bf16.msra.mxu0 %v433
    %541 = vmatprep.subr.bf16.mxu0 %v438
    %542 = vmatpush1.bf16.msra.mxu0 %v437
    %543 = vmatprep.subr.bf16.mxu0 %v442
    %544 = vmatpush1.bf16.msra.mxu0 %v441
    %545 = vmatprep.subr.bf16.mxu0 %v446
    %546 = vmatpush1.bf16.msra.mxu0 %v445
    %547 = vmatprep.subr.bf16.mxu0 %v450
    %548 = vmatpush1.bf16.msra.mxu0 %v449
    %549 = vmatprep.mubr.bf16.mxu0 %v108
    %550 = vmatmul.mubr.bf16.gmra.mrb[0].mxu0 %v107
    %v551 = vpop.f32.mrb[0].mxu0
    %v552 = vadd.f32 %v180, %v551
    %v553 = vpop.f32.mrb[0].mxu0
    %v554 = vadd.f32 %v184, %v553
    %v555 = vpop.f32.mrb[0].mxu0
    %v556 = vpop.f32.mrb[0].mxu0
    %557 = vdwg.mxu0
    %558 = vmatprep.subr.bf16.mxu0 %v392
    %559 = vmatpush1.bf16.msra.mxu0 %v391
    %560 = vmatprep.subr.bf16.mxu0 %v396
    %561 = vmatpush1.bf16.msra.mxu0 %v395
    %562 = vmatprep.subr.bf16.mxu0 %v400
    %563 = vmatpush1.bf16.msra.mxu0 %v399
    %564 = vmatprep.subr.bf16.mxu0 %v404
    %565 = vmatpush1.bf16.msra.mxu0 %v403
    %566 = vmatprep.subr.bf16.mxu0 %v408
    %567 = vmatpush1.bf16.msra.mxu0 %v407
    %568 = vmatprep.subr.bf16.mxu0 %v412
    %569 = vmatpush1.bf16.msra.mxu0 %v411
    %570 = vmatprep.subr.bf16.mxu0 %v416
    %571 = vmatpush1.bf16.msra.mxu0 %v415
    %572 = vmatprep.subr.bf16.mxu0 %v420
    %573 = vmatpush1.bf16.msra.mxu0 %v419
    %574 = vmatprep.subr.bf16.mxu0 %v424
    %575 = vmatpush1.bf16.msra.mxu0 %v423
    %576 = vmatprep.subr.bf16.mxu0 %v428
    %577 = vmatpush1.bf16.msra.mxu0 %v427
    %578 = vmatprep.subr.bf16.mxu0 %v432
    %579 = vmatpush1.bf16.msra.mxu0 %v431
    %580 = vmatprep.subr.bf16.mxu0 %v436
    %581 = vmatpush1.bf16.msra.mxu0 %v435
    %582 = vmatprep.subr.bf16.mxu0 %v440
    %583 = vmatpush1.bf16.msra.mxu0 %v439
    %584 = vmatprep.subr.bf16.mxu0 %v444
    %585 = vmatpush1.bf16.msra.mxu0 %v443
    %586 = vmatprep.subr.bf16.mxu0 %v448
    %587 = vmatpush1.bf16.msra.mxu0 %v447
    %588 = vmatprep.subr.bf16.mxu0 %v452
    %589 = vmatpush1.bf16.msra.mxu0 %v451
    %590 = vmatprep.mubr.bf16.mxu0 %v108
    %591 = vmatmul.mubr.bf16.gmra.mrb[0].mxu0 %v107
    %v592 = vpop.f32.mrb[0].mxu0
    %v593 = vadd.f32 %v188, %v592
    %v594 = vpop.f32.mrb[0].mxu0
    %v595 = vadd.f32 %v192, %v594
    %v596 = vpop.f32.mrb[0].mxu0
    %v597 = vpop.f32.mrb[0].mxu0
    %598 = vdwg.mxu0
    %v599 = vmax.f32 %v552, 0.0
    %v600 = vmax.f32 %v554, 0.0
    %v601 = vmax.f32 %v593, 0.0
    %v602 = vmax.f32 %v595, 0.0
    %v603 = vpack.c.bf16 %v599, %v599
    %v604 = vpack.c.bf16 %v600, %v600
    %v605 = vpack.c.bf16 %v601, %v601
    %v606 = vpack.c.bf16 %v602, %v602
    %v607 = vld [vmem:[%s4] sm:$0xf]
    %v608 = vld [vmem:[%s4 + $0x4] sm:$0xf]
    %v609 = vld [vmem:[%s4 + $0x8] sm:$0xf]
    %v610 = vld [vmem:[%s4 + $0xc] sm:$0xf]
    %v611 = vld [vmem:[%s4 + $0x10] sm:$0xf]
    %v612 = vld [vmem:[%s4 + $0x14] sm:$0xf]
    %v613 = vld [vmem:[%s4 + $0x18] sm:$0xf]
    %v614 = vld [vmem:[%s4 + $0x1c] sm:$0xf]
    %v615 = vld [vmem:[%s4 + $0x20] sm:$0xf]
    %v616 = vld [vmem:[%s4 + $0x24] sm:$0xf]
    %v617 = vld [vmem:[%s4 + $0x28] sm:$0xf]
    %v618 = vld [vmem:[%s4 + $0x2c] sm:$0xf]
    %v619 = vld [vmem:[%s4 + $0x30] sm:$0xf]
    %v620 = vld [vmem:[%s4 + $0x34] sm:$0xf]
    %v621 = vld [vmem:[%s4 + $0x38] sm:$0xf]
    %v622 = vld [vmem:[%s4 + $0x3c] sm:$0xf]
    %v623 = vld [vmem:[%s4 + $0x40] sm:$0xf]
    %v624 = vld [vmem:[%s4 + $0x44] sm:$0xf]
    %v625 = vld [vmem:[%s4 + $0x48] sm:$0xf]
    %v626 = vld [vmem:[%s4 + $0x4c] sm:$0xf]
    %v627 = vld [vmem:[%s4 + $0x50] sm:$0xf]
    %v628 = vld [vmem:[%s4 + $0x54] sm:$0xf]
    %v629 = vld [vmem:[%s4 + $0x58] sm:$0xf]
    %v630 = vld [vmem:[%s4 + $0x5c] sm:$0xf]
    %v631 = vld [vmem:[%s4 + $0x60] sm:$0xf]
    %v632 = vld [vmem:[%s4 + $0x64] sm:$0xf]
    %v633 = vld [vmem:[%s4 + $0x68] sm:$0xf]
    %v634 = vld [vmem:[%s4 + $0x6c] sm:$0xf]
    %v635 = vld [vmem:[%s4 + $0x70] sm:$0xf]
    %v636 = vld [vmem:[%s4 + $0x74] sm:$0xf]
    %v637 = vld [vmem:[%s4 + $0x78] sm:$0xf]
    %v638 = vld [vmem:[%s4 + $0x7c] sm:$0xf]
    %v639 = vld [vmem:[%s4 + $0x80] sm:$0xf]
    %v640 = vld [vmem:[%s4 + $0x84] sm:$0xf]
    %v641 = vld [vmem:[%s4 + $0x88] sm:$0xf]
    %v642 = vld [vmem:[%s4 + $0x8c] sm:$0xf]
    %v643 = vld [vmem:[%s4 + $0x90] sm:$0xf]
    %v644 = vld [vmem:[%s4 + $0x94] sm:$0xf]
    %v645 = vld [vmem:[%s4 + $0x98] sm:$0xf]
    %v646 = vld [vmem:[%s4 + $0x9c] sm:$0xf]
    %v647 = vld [vmem:[%s4 + $0xa0] sm:$0xf]
    %v648 = vld [vmem:[%s4 + $0xa4] sm:$0xf]
    %v649 = vld [vmem:[%s4 + $0xa8] sm:$0xf]
    %v650 = vld [vmem:[%s4 + $0xac] sm:$0xf]
    %v651 = vld [vmem:[%s4 + $0xb0] sm:$0xf]
    %v652 = vld [vmem:[%s4 + $0xb4] sm:$0xf]
    %v653 = vld [vmem:[%s4 + $0xb8] sm:$0xf]
    %v654 = vld [vmem:[%s4 + $0xbc] sm:$0xf]
    %v655 = vld [vmem:[%s4 + $0xc0] sm:$0xf]
    %v656 = vld [vmem:[%s4 + $0xc4] sm:$0xf]
    %v657 = vld [vmem:[%s4 + $0xc8] sm:$0xf]
    %v658 = vld [vmem:[%s4 + $0xcc] sm:$0xf]
    %v659 = vld [vmem:[%s4 + $0xd0] sm:$0xf]
    %v660 = vld [vmem:[%s4 + $0xd4] sm:$0xf]
    %v661 = vld [vmem:[%s4 + $0xd8] sm:$0xf]
    %v662 = vld [vmem:[%s4 + $0xdc] sm:$0xf]
    %v663 = vld [vmem:[%s4 + $0xe0] sm:$0xf]
    %v664 = vld [vmem:[%s4 + $0xe4] sm:$0xf]
    %v665 = vld [vmem:[%s4 + $0xe8] sm:$0xf]
    %v666 = vld [vmem:[%s4 + $0xec] sm:$0xf]
    %v667 = vld [vmem:[%s4 + $0xf0] sm:$0xf]
    %v668 = vld [vmem:[%s4 + $0xf4] sm:$0xf]
    %v669 = vld [vmem:[%s4 + $0xf8] sm:$0xf]
    %v670 = vld [vmem:[%s4 + $0xfc] sm:$0xf]
    %v671 = vld [vmem:[#allocation6] sm:$0xf]
    %v672 = vld [vmem:[#allocation6 + $0x4] sm:$0xf]
    %v675 = vunpack.c.l.b16 %v671
    %v676 = vunpack.c.l.b16 %v672
    %v677 = vpack.c.b16 %v676, %v675
    %vm679 = vcmask 130048
    %v681 = vsel %vm679, %v110, 0
    %683 = vmatprep.subr.bf16.mxu0 0
    %684 = vmatpush1.bf16.msra.mxu0 %v677
    %685 = vmatprep.subr.bf16.mxu0 0
    %686 = vmatpush1.bf16.msra.mxu0 0
    %687 = vmatprep.subr.bf16.mxu0 0
    %688 = vmatpush1.bf16.msra.mxu0 0
    %689 = vmatprep.subr.bf16.mxu0 0
    %690 = vmatpush1.bf16.msra.mxu0 0
    %691 = vmatprep.subr.bf16.mxu0 0
    %692 = vmatpush1.bf16.msra.mxu0 0
    %693 = vmatprep.subr.bf16.mxu0 0
    %694 = vmatpush1.bf16.msra.mxu0 0
    %695 = vmatprep.subr.bf16.mxu0 0
    %696 = vmatpush1.bf16.msra.mxu0 0
    %697 = vmatprep.subr.bf16.mxu0 0
    %698 = vmatpush1.bf16.msra.mxu0 0
    %699 = vmatprep.subr.bf16.mxu0 0
    %700 = vmatpush1.bf16.msra.mxu0 0
    %701 = vmatprep.subr.bf16.mxu0 0
    %702 = vmatpush1.bf16.msra.mxu0 0
    %703 = vmatprep.subr.bf16.mxu0 0
    %704 = vmatpush1.bf16.msra.mxu0 0
    %705 = vmatprep.subr.bf16.mxu0 0
    %706 = vmatpush1.bf16.msra.mxu0 0
    %707 = vmatprep.subr.bf16.mxu0 0
    %708 = vmatpush1.bf16.msra.mxu0 0
    %709 = vmatprep.subr.bf16.mxu0 0
    %710 = vmatpush1.bf16.msra.mxu0 0
    %711 = vmatprep.subr.bf16.mxu0 0
    %712 = vmatpush1.bf16.msra.mxu0 0
    %713 = vmatprep.subr.bf16.mxu0 0
    %714 = vmatpush1.bf16.msra.mxu0 0
    %715 = vmatprep.mubr.bf16.mxu0 0
    %716 = vmatmul.mubr.bf16.gmra.mrb[0].mxu0 %v681
    %v717 = vpop.f32.mrb[0].mxu0
    %v718 = vadd.f32 0.0, %v717
    %v719 = vpop.f32.mrb[0].mxu0
    %v720 = vpop.f32.mrb[0].mxu0
    %v721 = vpop.f32.mrb[0].mxu0
    %722 = vdwg.mxu0
    %v787 = vunpack.c.l.b16 %v607
    %v788 = vunpack.c.l.b16 %v608
    %v789 = vunpack.c.l.b16 %v609
    %v790 = vunpack.c.l.b16 %v610
    %v791 = vunpack.c.l.b16 %v611
    %v792 = vunpack.c.l.b16 %v612
    %v793 = vunpack.c.l.b16 %v613
    %v794 = vunpack.c.l.b16 %v614
    %v795 = vunpack.c.l.b16 %v615
    %v796 = vunpack.c.l.b16 %v616
    %v797 = vunpack.c.l.b16 %v617
    %v798 = vunpack.c.l.b16 %v618
    %v799 = vunpack.c.l.b16 %v619
    %v800 = vunpack.c.l.b16 %v620
    %v801 = vunpack.c.l.b16 %v621
    %v802 = vunpack.c.l.b16 %v622
    %v803 = vunpack.c.l.b16 %v623
    %v804 = vunpack.c.l.b16 %v624
    %v805 = vunpack.c.l.b16 %v625
    %v806 = vunpack.c.l.b16 %v626
    %v807 = vunpack.c.l.b16 %v627
    %v808 = vunpack.c.l.b16 %v628
    %v809 = vunpack.c.l.b16 %v629
    %v810 = vunpack.c.l.b16 %v630
    %v811 = vunpack.c.l.b16 %v631
    %v812 = vunpack.c.l.b16 %v632
    %v813 = vunpack.c.l.b16 %v633
    %v814 = vunpack.c.l.b16 %v634
    %v815 = vunpack.c.l.b16 %v635
    %v816 = vunpack.c.l.b16 %v636
    %v817 = vunpack.c.l.b16 %v637
    %v818 = vunpack.c.l.b16 %v638
    %v819 = vunpack.c.l.b16 %v639
    %v820 = vunpack.c.l.b16 %v640
    %v821 = vunpack.c.l.b16 %v641
    %v822 = vunpack.c.l.b16 %v642
    %v823 = vunpack.c.l.b16 %v643
    %v824 = vunpack.c.l.b16 %v644
    %v825 = vunpack.c.l.b16 %v645
    %v826 = vunpack.c.l.b16 %v646
    %v827 = vunpack.c.l.b16 %v647
    %v828 = vunpack.c.l.b16 %v648
    %v829 = vunpack.c.l.b16 %v649
    %v830 = vunpack.c.l.b16 %v650
    %v831 = vunpack.c.l.b16 %v651
    %v832 = vunpack.c.l.b16 %v652
    %v833 = vunpack.c.l.b16 %v653
    %v834 = vunpack.c.l.b16 %v654
    %v835 = vunpack.c.l.b16 %v655
    %v836 = vunpack.c.l.b16 %v656
    %v837 = vunpack.c.l.b16 %v657
    %v838 = vunpack.c.l.b16 %v658
    %v839 = vunpack.c.l.b16 %v659
    %v840 = vunpack.c.l.b16 %v660
    %v841 = vunpack.c.l.b16 %v661
    %v842 = vunpack.c.l.b16 %v662
    %v843 = vunpack.c.l.b16 %v663
    %v844 = vunpack.c.l.b16 %v664
    %v845 = vunpack.c.l.b16 %v665
    %v846 = vunpack.c.l.b16 %v666
    %v847 = vunpack.c.l.b16 %v667
    %v848 = vunpack.c.l.b16 %v668
    %v849 = vunpack.c.l.b16 %v669
    %v850 = vunpack.c.l.b16 %v670
    %v851 = vpack.c.b16 %v788, %v787
    %v852 = vpack.c.b16 %v790, %v789
    %v853 = vpack.c.b16 %v792, %v791
    %v854 = vpack.c.b16 %v794, %v793
    %v855 = vpack.c.b16 %v796, %v795
    %v856 = vpack.c.b16 %v798, %v797
    %v857 = vpack.c.b16 %v800, %v799
    %v858 = vpack.c.b16 %v802, %v801
    %v859 = vpack.c.b16 %v804, %v803
    %v860 = vpack.c.b16 %v806, %v805
    %v861 = vpack.c.b16 %v808, %v807
    %v862 = vpack.c.b16 %v810, %v809
    %v863 = vpack.c.b16 %v812, %v811
    %v864 = vpack.c.b16 %v814, %v813
    %v865 = vpack.c.b16 %v816, %v815
    %v866 = vpack.c.b16 %v818, %v817
    %v867 = vpack.c.b16 %v820, %v819
    %v868 = vpack.c.b16 %v822, %v821
    %v869 = vpack.c.b16 %v824, %v823
    %v870 = vpack.c.b16 %v826, %v825
    %v871 = vpack.c.b16 %v828, %v827
    %v872 = vpack.c.b16 %v830, %v829
    %v873 = vpack.c.b16 %v832, %v831
    %v874 = vpack.c.b16 %v834, %v833
    %v875 = vpack.c.b16 %v836, %v835
    %v876 = vpack.c.b16 %v838, %v837
    %v877 = vpack.c.b16 %v840, %v839
    %v878 = vpack.c.b16 %v842, %v841
    %v879 = vpack.c.b16 %v844, %v843
    %v880 = vpack.c.b16 %v846, %v845
    %v881 = vpack.c.b16 %v848, %v847
    %v882 = vpack.c.b16 %v850, %v849
    %915 = vmatprep.subr.bf16.mxu0 0
    %916 = vmatpush1.bf16.msra.mxu0 %v851
    %917 = vmatprep.subr.bf16.mxu0 0
    %918 = vmatpush1.bf16.msra.mxu0 %v852
    %919 = vmatprep.subr.bf16.mxu0 0
    %920 = vmatpush1.bf16.msra.mxu0 %v853
    %921 = vmatprep.subr.bf16.mxu0 0
    %922 = vmatpush1.bf16.msra.mxu0 %v854
    %923 = vmatprep.subr.bf16.mxu0 0
    %924 = vmatpush1.bf16.msra.mxu0 %v855
    %925 = vmatprep.subr.bf16.mxu0 0
    %926 = vmatpush1.bf16.msra.mxu0 %v856
    %927 = vmatprep.subr.bf16.mxu0 0
    %928 = vmatpush1.bf16.msra.mxu0 %v857
    %929 = vmatprep.subr.bf16.mxu0 0
    %930 = vmatpush1.bf16.msra.mxu0 %v858
    %931 = vmatprep.subr.bf16.mxu0 0
    %932 = vmatpush1.bf16.msra.mxu0 %v859
    %933 = vmatprep.subr.bf16.mxu0 0
    %934 = vmatpush1.bf16.msra.mxu0 %v860
    %935 = vmatprep.subr.bf16.mxu0 0
    %936 = vmatpush1.bf16.msra.mxu0 %v861
    %937 = vmatprep.subr.bf16.mxu0 0
    %938 = vmatpush1.bf16.msra.mxu0 %v862
    %939 = vmatprep.subr.bf16.mxu0 0
    %940 = vmatpush1.bf16.msra.mxu0 %v863
    %941 = vmatprep.subr.bf16.mxu0 0
    %942 = vmatpush1.bf16.msra.mxu0 %v864
    %943 = vmatprep.subr.bf16.mxu0 0
    %944 = vmatpush1.bf16.msra.mxu0 %v865
    %945 = vmatprep.subr.bf16.mxu0 0
    %946 = vmatpush1.bf16.msra.mxu0 %v866
    %947 = vmatprep.mubr.bf16.mxu0 %v604
    %948 = vmatmul.mubr.bf16.gmra.mrb[0].mxu0 %v603
    %v949 = vpop.f32.mrb[0].mxu0
    %v950 = vadd.f32 %v718, %v949
    %v951 = vpop.f32.mrb[0].mxu0
    %v952 = vpop.f32.mrb[0].mxu0
    %v953 = vpop.f32.mrb[0].mxu0
    %954 = vdwg.mxu0
    %955 = vmatprep.subr.bf16.mxu0 0
    %956 = vmatpush1.bf16.msra.mxu0 %v867
    %957 = vmatprep.subr.bf16.mxu0 0
    %958 = vmatpush1.bf16.msra.mxu0 %v868
    %959 = vmatprep.subr.bf16.mxu0 0
    %960 = vmatpush1.bf16.msra.mxu0 %v869
    %961 = vmatprep.subr.bf16.mxu0 0
    %962 = vmatpush1.bf16.msra.mxu0 %v870
    %963 = vmatprep.subr.bf16.mxu0 0
    %964 = vmatpush1.bf16.msra.mxu0 %v871
    %965 = vmatprep.subr.bf16.mxu0 0
    %966 = vmatpush1.bf16.msra.mxu0 %v872
    %967 = vmatprep.subr.bf16.mxu0 0
    %968 = vmatpush1.bf16.msra.mxu0 %v873
    %969 = vmatprep.subr.bf16.mxu0 0
    %970 = vmatpush1.bf16.msra.mxu0 %v874
    %971 = vmatprep.subr.bf16.mxu0 0
    %972 = vmatpush1.bf16.msra.mxu0 %v875
    %973 = vmatprep.subr.bf16.mxu0 0
    %974 = vmatpush1.bf16.msra.mxu0 %v876
    %975 = vmatprep.subr.bf16.mxu0 0
    %976 = vmatpush1.bf16.msra.mxu0 %v877
    %977 = vmatprep.subr.bf16.mxu0 0
    %978 = vmatpush1.bf16.msra.mxu0 %v878
    %979 = vmatprep.subr.bf16.mxu0 0
    %980 = vmatpush1.bf16.msra.mxu0 %v879
    %981 = vmatprep.subr.bf16.mxu0 0
    %982 = vmatpush1.bf16.msra.mxu0 %v880
    %983 = vmatprep.subr.bf16.mxu0 0
    %984 = vmatpush1.bf16.msra.mxu0 %v881
    %985 = vmatprep.subr.bf16.mxu0 0
    %986 = vmatpush1.bf16.msra.mxu0 %v882
    %987 = vmatprep.mubr.bf16.mxu0 %v606
    %988 = vmatmul.mubr.bf16.gmra.mrb[0].mxu0 %v605
    %v989 = vpop.f32.mrb[0].mxu0
    %v990 = vadd.f32 %v950, %v989
    %v991 = vpop.f32.mrb[0].mxu0
    %v992 = vpop.f32.mrb[0].mxu0
    %v993 = vpop.f32.mrb[0].mxu0
    %994 = vdwg.mxu0
    %v995 = vld [vmem:[#allocation7] sm:$0x1]
    %v997 = vlaneseq
    %v998 = vshrl.u32 %v997, 7
    %v999 = vsub.s32 0, %v998
    %v1000 = vrot.slane %v995, %v999
    %v1002 = vadd.f32 %v990, %v1000
    %v1003 = vmax.f32 %v1002, 0.0
    %v1004 = vpack.c.bf16 %v1003, %v1003
    %v1005 = vld [vmem:[%s7] sm:$0xf]
    %v1006 = vld [vmem:[%s7 + $0x4] sm:$0xf]
    %v1007 = vld [vmem:[%s7 + $0x8] sm:$0xf]
    %v1008 = vld [vmem:[%s7 + $0xc] sm:$0xf]
    %v1009 = vld [vmem:[%s7 + $0x10] sm:$0xf]
    %v1010 = vld [vmem:[%s7 + $0x14] sm:$0xf]
    %v1011 = vld [vmem:[%s7 + $0x18] sm:$0xf]
    %v1012 = vld [vmem:[%s7 + $0x1c] sm:$0xf]
    %v1013 = vld [vmem:[%s7 + $0x20] sm:$0xf]
    %v1014 = vld [vmem:[%s7 + $0x24] sm:$0xf]
    %v1015 = vld [vmem:[%s7 + $0x28] sm:$0xf]
    %v1016 = vld [vmem:[%s7 + $0x2c] sm:$0xf]
    %v1017 = vld [vmem:[%s7 + $0x30] sm:$0xf]
    %v1018 = vld [vmem:[%s7 + $0x34] sm:$0xf]
    %v1019 = vld [vmem:[%s7 + $0x38] sm:$0xf]
    %v1020 = vld [vmem:[%s7 + $0x3c] sm:$0xf]
    %v1021 = vld [vmem:[#allocation9] sm:$0x1]
    %v1023 = vlaneseq
    %v1024 = vshrl.u32 %v1023, 7
    %v1025 = vsub.s32 0, %v1024
    %v1026 = vrot.slane %v1021, %v1025
    %v1044 = vunpack.c.l.b16 %v1005
    %v1045 = vunpack.c.l.b16 %v1006
    %v1046 = vunpack.c.l.b16 %v1007
    %v1047 = vunpack.c.l.b16 %v1008
    %v1048 = vunpack.c.l.b16 %v1009
    %v1049 = vunpack.c.l.b16 %v1010
    %v1050 = vunpack.c.l.b16 %v1011
    %v1051 = vunpack.c.l.b16 %v1012
    %v1052 = vunpack.c.l.b16 %v1013
    %v1053 = vunpack.c.l.b16 %v1014
    %v1054 = vunpack.c.l.b16 %v1015
    %v1055 = vunpack.c.l.b16 %v1016
    %v1056 = vunpack.c.l.b16 %v1017
    %v1057 = vunpack.c.l.b16 %v1018
    %v1058 = vunpack.c.l.b16 %v1019
    %v1059 = vunpack.c.l.b16 %v1020
    %v1060 = vpack.c.b16 %v1045, %v1044
    %v1061 = vpack.c.b16 %v1047, %v1046
    %v1062 = vpack.c.b16 %v1049, %v1048
    %v1063 = vpack.c.b16 %v1051, %v1050
    %v1064 = vpack.c.b16 %v1053, %v1052
    %v1065 = vpack.c.b16 %v1055, %v1054
    %v1066 = vpack.c.b16 %v1057, %v1056
    %v1067 = vpack.c.b16 %v1059, %v1058
    %1076 = vmatprep.subr.bf16.mxu0 0
    %1077 = vmatpush1.bf16.msra.mxu0 %v1060
    %1078 = vmatprep.subr.bf16.mxu0 0
    %1079 = vmatpush1.bf16.msra.mxu0 %v1061
    %1080 = vmatprep.subr.bf16.mxu0 0
    %1081 = vmatpush1.bf16.msra.mxu0 %v1062
    %1082 = vmatprep.subr.bf16.mxu0 0
    %1083 = vmatpush1.bf16.msra.mxu0 %v1063
    %1084 = vmatprep.subr.bf16.mxu0 0
    %1085 = vmatpush1.bf16.msra.mxu0 %v1064
    %1086 = vmatprep.subr.bf16.mxu0 0
    %1087 = vmatpush1.bf16.msra.mxu0 %v1065
    %1088 = vmatprep.subr.bf16.mxu0 0
    %1089 = vmatpush1.bf16.msra.mxu0 %v1066
    %1090 = vmatprep.subr.bf16.mxu0 0
    %1091 = vmatpush1.bf16.msra.mxu0 %v1067
    %1092 = vmatprep.subr.bf16.mxu0 0
    %1093 = vmatpush1.bf16.msra.mxu0 0
    %1094 = vmatprep.subr.bf16.mxu0 0
    %1095 = vmatpush1.bf16.msra.mxu0 0
    %1096 = vmatprep.subr.bf16.mxu0 0
    %1097 = vmatpush1.bf16.msra.mxu0 0
    %1098 = vmatprep.subr.bf16.mxu0 0
    %1099 = vmatpush1.bf16.msra.mxu0 0
    %1100 = vmatprep.subr.bf16.mxu0 0
    %1101 = vmatpush1.bf16.msra.mxu0 0
    %1102 = vmatprep.subr.bf16.mxu0 0
    %1103 = vmatpush1.bf16.msra.mxu0 0
    %1104 = vmatprep.subr.bf16.mxu0 0
    %1105 = vmatpush1.bf16.msra.mxu0 0
    %1106 = vmatprep.subr.bf16.mxu0 0
    %1107 = vmatpush1.bf16.msra.mxu0 0
    %1108 = vmatprep.mubr.bf16.mxu0 0
    %1109 = vmatmul.mubr.bf16.gmra.mrb[0].mxu0 %v1004
    %v1110 = vpop.f32.mrb[0].mxu0
    %v1111 = vadd.f32 %v1026, %v1110
    %v1112 = vpop.f32.mrb[0].mxu0
    %v1113 = vpop.f32.mrb[0].mxu0
    %v1114 = vpop.f32.mrb[0].mxu0
    %1115 = vdwg.mxu0
    %v1116 = vpack.c.bf16 %v1111, %v1111
    %1117 = vst [vmem:[%s9] sm:$0x1] %v1116
    // Predicated region
    $region58: #{quarto_forward.1} parent=1 // pred_check
      _
    $region59: #{quarto_forward.1} parent=1 // pred_check_branch
      %1119 = sbr.rel (0) target = $region61
    $region60: #{quarto_forward.1} parent=1 // pred_region
      _
    $region61: #{quarto_forward.1} parent=1 // pred_fallthru
      _
    // Predicated region
    $region62: #{quarto_forward.1} parent=1 // pred_check
      _
    $region63: #{quarto_forward.1} parent=1 // pred_check_branch
      %1121 = sbr.rel (0) target = $region65
    $region64: #{quarto_forward.1} parent=1 // pred_region
      _
    $region65: #{quarto_forward.1} parent=1 // pred_fallthru
      _
    %1122 = vsyncpa [#allocation3], 1
    %1123 = vsyncpa [#allocation5], 1
    %1124 = vsyncpa [#allocation8], 1

</llo_original>
